<compile_context>
chip_gen: v7x
topology: tpu7x:2x2x1
jax: 0.10.0
libtpu: 0.0.40
codegen_flags: <defaults>
</compile_context>

<pallas_src>
import functools

import jax
import jax.numpy as jnp
from jax.experimental import pallas as pl
from jax.experimental.pallas import tpu as pltpu


def _cdiv(a, b):
    return -(-a // b)


def _round_up(a, b):
    return _cdiv(a, b) * b


def _mae_kernel(yp_ref, yt_ref, out_ref, acc_ref, *,
                n_rows, n_cols, tile_r, tile_c, sub,
                row_ragged, col_ragged, native_diff):
    i = pl.program_id(0)   # row-block axis ("parallel")
    j = pl.program_id(1)   # column-block / reduction axis ("arbitrary")
    n_slabs = tile_r // sub

    @pl.when(j == 0)
    def _():
        acc_ref[...] = jnp.zeros_like(acc_ref)

    def slab_diff(s):
        yp = yp_ref[s * sub:(s + 1) * sub, :]
        yt = yt_ref[s * sub:(s + 1) * sub, :]
        if native_diff:
            # bf16/f32 sub+abs on the VPU, widen only for the accumulate.
            return jnp.abs(yp - yt).astype(jnp.float32)
        return jnp.abs(yp.astype(jnp.float32) - yt.astype(jnp.float32))

    def accumulate(masked):
        acc = acc_ref[...]
        if masked:
            col_ok = (j * tile_c + jax.lax.broadcasted_iota(
                jnp.int32, (sub, tile_c), 1)) < n_cols
            row_iota = jax.lax.broadcasted_iota(jnp.int32, (sub, tile_c), 0)
        for s in range(n_slabs):
            d = slab_diff(s)
            if masked:
                rows = i * tile_r + s * sub + row_iota
                d = jnp.where((rows < n_rows) & col_ok, d, 0.0)
            acc = acc + d
        acc_ref[...] = acc

    if not (row_ragged or col_ragged):
        accumulate(False)
    else:
        conds = []
        if row_ragged:
            conds.append(i == pl.num_programs(0) - 1)
        if col_ragged:
            conds.append(j == pl.num_programs(1) - 1)
        is_edge = conds[0]
        for c in conds[1:]:
            is_edge = jnp.logical_or(is_edge, c)

        @pl.when(jnp.logical_not(is_edge))
        def _():
            accumulate(False)

        @pl.when(is_edge)
        def _():
            accumulate(True)

    @pl.when(j == pl.num_programs(1) - 1)
    def _():
        out_ref[...] = acc_ref[...]


def _mae_partial_sum_2d(y_pred, y_true, tile_r, tile_c):
    """Sum of |y_pred - y_true| over a 2D array via the Pallas kernel."""
    R, C = y_pred.shape
    dt = y_pred.dtype
    itemsize = jnp.dtype(dt).itemsize
    sub = max(8, 32 // max(itemsize, 1))   # f32 -> 8, bf16 -> 16, i8 -> 32

    tc = min(_round_up(tile_c, 128), _round_up(C, 128))
    tr = min(_round_up(tile_r, sub), _round_up(R, sub))
    # Keep >= 2 row blocks when the data allows it so the "parallel" axis
    # actually shards across v7x's two TensorCores (no-op on 1-TC chips).
    if _cdiv(R, tr) == 1 and R >= 2 * sub:
        tr = _round_up(_cdiv(R, 2), sub)

    grid_r = _cdiv(R, tr)
    grid_c = _cdiv(C, tc)
    row_ragged = (R % tr) != 0
    col_ragged = (C % tc) != 0
    native_diff = jnp.dtype(dt) in (jnp.dtype(jnp.float32),
                                    jnp.dtype(jnp.bfloat16))

    # Explicit scoped-VMEM budget: 2 inputs x 2 pipeline buffers + small f32
    # accumulator + double-buffered output slab + headroom.  ~36 MiB at the
    # default 1024x2048 f32 tile -> safe on v5e/v6e/v7x.
    in_bytes = tr * tc * itemsize
    acc_bytes = sub * tc * 4
    out_blk_bytes = sub * tc * 4
    vmem_limit = int(2 * 2 * in_bytes + acc_bytes + 2 * out_blk_bytes
                     + (4 << 20))

    kernel = functools.partial(
        _mae_kernel, n_rows=R, n_cols=C, tile_r=tr, tile_c=tc, sub=sub,
        row_ragged=row_ragged, col_ragged=col_ragged, native_diff=native_diff)

    partials = pl.pallas_call(
        kernel,
        out_shape=jax.ShapeDtypeStruct((grid_r * sub, tc), jnp.float32),
        grid_spec=pltpu.PrefetchScalarGridSpec(
            num_scalar_prefetch=0,
            grid=(grid_r, grid_c),
            in_specs=[
                pl.BlockSpec((tr, tc), lambda i, j: (i, j)),
                pl.BlockSpec((tr, tc), lambda i, j: (i, j)),
            ],
            out_specs=pl.BlockSpec((sub, tc), lambda i, j: (i, 0)),
            scratch_shapes=[pltpu.VMEM((sub, tc), jnp.float32)],
        ),
        compiler_params=pltpu.CompilerParams(
            dimension_semantics=("parallel", "arbitrary"),
            vmem_limit_bytes=vmem_limit,
        ),
        cost_estimate=pl.CostEstimate(
            flops=2 * R * C,
            transcendentals=0,
            bytes_accessed=2 * R * C * itemsize + grid_r * sub * tc * 4,
        ),
    )(y_pred, y_true)

    # Tiny final reduction in the wrapper (XLA).
    return jnp.sum(partials)


def mae_loss(y_pred, y_true, *, tile_r=1024, tile_c=2048):
    """Mean absolute error between y_pred and y_true ((N,) or (N, S))."""
    assert y_pred.shape == y_true.shape, "Shape mismatch."
    total = int(y_pred.size)
    tail_sum = jnp.float32(0.0)

    if y_pred.ndim == 1:
        # Sublane-dense 2D layout: rows x cols (cols >= 128).  No padding:
        # the aligned prefix rows*cols is reshaped (free when it is the whole
        # array) and the short tail is summed in the wrapper.
        n = y_pred.shape[0]
        cols = max(128, min(_round_up(tile_c, 128),
                            _round_up(_cdiv(n, 8), 128)))
        rows = n // cols
        main = rows * cols
        tail = n - main
        if tail:
            tail_sum = jnp.sum(jnp.abs(
                y_pred[main:].astype(jnp.float32) -
                y_true[main:].astype(jnp.float32)))
        if rows == 0:
            # Fewer than `cols` elements: the whole thing is the tail.
            return tail_sum / jnp.float32(total)
        yp2 = (y_pred if tail == 0 else y_pred[:main]).reshape(rows, cols)
        yt2 = (y_true if tail == 0 else y_true[:main]).reshape(rows, cols)
    else:
        assert y_pred.ndim == 2, "Expected (n_nodes,) or (n_nodes, n_samples)."
        yp2, yt2 = y_pred, y_true

    main_sum = _mae_partial_sum_2d(yp2, yt2, tile_r, tile_c)
    return (main_sum + tail_sum) / jnp.float32(total)


# TODO(synk): the PyTorch module's `to_numpy=True` path (host-side float()) is
# intentionally not replicated; the wrapper returns a JAX f32 scalar.


if __name__ == "__main__":
    key = jax.random.PRNGKey(0)
    k1, k2, k3, k4, k5, k6 = jax.random.split(key, 6)

    # 2D case: (n_nodes, n_samples), deliberately not (8,128)-aligned
    # (exercises the edge-block mask path).
    n_nodes, n_samples = 16, 200
    yp2 = jax.random.normal(k1, (n_nodes, n_samples), jnp.float32)
    yt2 = jax.random.normal(k2, (n_nodes, n_samples), jnp.float32)
    loss2 = jax.block_until_ready(mae_loss(yp2, yt2))
    ref2 = jnp.mean(jnp.abs(yp2 - yt2))
    assert jnp.allclose(loss2, ref2, rtol=1e-5, atol=1e-6), (loss2, ref2)

    # 1D case: (n_nodes,) with a ragged tail handled outside the kernel.
    n = 1000
    yp1 = jax.random.normal(k3, (n,), jnp.float32)
    yt1 = jax.random.normal(k4, (n,), jnp.float32)
    loss1 = jax.block_until_ready(mae_loss(yp1, yt1))
    ref1 = jnp.mean(jnp.abs(yp1 - yt1))
    assert jnp.allclose(loss1, ref1, rtol=1e-5, atol=1e-6), (loss1, ref1)

    # Multi-block 2D case with small tiles: exercises the reduction axis
    # (grid_c > 1), the interior/edge pl.when split, and the accumulator
    # init/epilogue.
    yp3 = jax.random.normal(k5, (24, 300), jnp.float32)
    yt3 = jax.random.normal(k6, (24, 300), jnp.float32)
    loss3 = jax.block_until_ready(mae_loss(yp3, yt3, tile_r=8, tile_c=128))
    ref3 = jnp.mean(jnp.abs(yp3 - yt3))
    assert jnp.allclose(loss3, ref3, rtol=1e-5, atol=1e-6), (loss3, ref3)

    # bf16 case: native-dtype sub/abs path, f32 accumulation.
    yp4 = yp2.astype(jnp.bfloat16)
    yt4 = yt2.astype(jnp.bfloat16)
    loss4 = jax.block_until_ready(mae_loss(yp4, yt4))
    ref4 = jnp.mean(jnp.abs(yp4.astype(jnp.float32) - yt4.astype(jnp.float32)))
    assert jnp.allclose(loss4, ref4, rtol=2e-2, atol=1e-3), (loss4, ref4)

    print("KERNEL_OK")
</pallas_src>

<mosaic_0001>
module attributes {stable_mosaic.version = 11 : i64} {
  func.func @_mae_kernel(%arg0: i32, %arg1: i32, %arg2: memref<8x256xf32, #tpu.memory_space<vmem>>, %arg3: memref<8x256xf32, #tpu.memory_space<vmem>>, %arg4: memref<8x256xf32, #tpu.memory_space<vmem>>, %arg5: memref<8x256xf32, #tpu.memory_space<vmem>>) attributes {dimension_semantics = [#tpu.dimension_semantics<parallel>, #tpu.dimension_semantics<arbitrary>], iteration_bounds = array<i64: 2, 1>, scalar_prefetch = 0 : i64, scratch_operands = 1 : i64, tpu.core_type = #tpu.core_type<tc>, window_params = [{transform_indices = @transform_0, window_bounds = array<i64: 8, 256>}, {transform_indices = @transform_1, window_bounds = array<i64: 8, 256>}, {transform_indices = @transform_2, window_bounds = array<i64: 8, 256>}]} {
    %c0_i32 = arith.constant 0 : i32
    %0 = arith.cmpi eq, %arg1, %c0_i32 : i32
    %1 = arith.extui %0 : i1 to i32
    %c0_i32_0 = arith.constant 0 : i32
    %2 = arith.cmpi ne, %1, %c0_i32_0 : i32
    scf.if %2 {
      %cst = arith.constant 0.000000e+00 : f32
      %12 = vector.broadcast %cst : f32 to vector<8x256xf32>
      %c0 = arith.constant 0 : index
      %c0_6 = arith.constant 0 : index
      %13 = vector.load %arg5[%c0, %c0_6] : memref<8x256xf32, #tpu.memory_space<vmem>>, vector<8x256xf32>
      tpu.vector_store %arg5[%c0, %c0_6], %12 {strides = array<i32>} : memref<8x256xf32, #tpu.memory_space<vmem>>, vector<8x256xf32>,
    } else {
    }
    %c0_i32_1 = arith.constant 0 : i32
    %3 = arith.cmpi eq, %arg1, %c0_i32_1 : i32
    %true = arith.constant true
    %4 = arith.xori %3, %true : i1
    %5 = arith.extui %4 : i1 to i32
    %c0_i32_2 = arith.constant 0 : i32
    %6 = arith.cmpi ne, %5, %c0_i32_2 : i32
    scf.if %6 {
      %c0 = arith.constant 0 : index
      %c0_6 = arith.constant 0 : index
      %12 = vector.load %arg5[%c0, %c0_6] : memref<8x256xf32, #tpu.memory_space<vmem>>, vector<8x256xf32>
      %c0_7 = arith.constant 0 : index
      %c0_8 = arith.constant 0 : index
      %13 = vector.load %arg2[%c0_7, %c0_8] : memref<8x256xf32, #tpu.memory_space<vmem>>, vector<8x256xf32>
      %c0_9 = arith.constant 0 : index
      %c0_10 = arith.constant 0 : index
      %14 = vector.load %arg3[%c0_9, %c0_10] : memref<8x256xf32, #tpu.memory_space<vmem>>, vector<8x256xf32>
      %15 = arith.subf %13, %14 : vector<8x256xf32>
      %16 = math.absf %15 : vector<8x256xf32>
      %17 = arith.addf %12, %16 : vector<8x256xf32>
      %c0_11 = arith.constant 0 : index
      %c0_12 = arith.constant 0 : index
      %18 = vector.load %arg5[%c0_11, %c0_12] : memref<8x256xf32, #tpu.memory_space<vmem>>, vector<8x256xf32>
      tpu.vector_store %arg5[%c0_11, %c0_12], %17 {strides = array<i32>} : memref<8x256xf32, #tpu.memory_space<vmem>>, vector<8x256xf32>,
    } else {
    }
    %7 = arith.extui %3 : i1 to i32
    %c0_i32_3 = arith.constant 0 : i32
    %8 = arith.cmpi ne, %7, %c0_i32_3 : i32
    scf.if %8 {
      %c0 = arith.constant 0 : index
      %c0_6 = arith.constant 0 : index
      %12 = vector.load %arg5[%c0, %c0_6] : memref<8x256xf32, #tpu.memory_space<vmem>>, vector<8x256xf32>
      %c256_i32 = arith.constant 256 : i32
      %13 = arith.muli %arg1, %c256_i32 : i32
      %14 = tpu.iota {dimensions = array<i32: 1>} : vector<8x256xi32>
      %15 = vector.broadcast %13 : i32 to vector<8x256xi32>
      %16 = arith.addi %15, %14 : vector<8x256xi32>
      %c200_i32 = arith.constant 200 : i32
      %17 = vector.broadcast %c200_i32 : i32 to vector<8x256xi32>
      %18 = arith.cmpi slt, %16, %17 : vector<8x256xi32>
      %19 = tpu.iota {dimensions = array<i32: 0>} : vector<8x256xi32>
      %c0_7 = arith.constant 0 : index
      %c0_8 = arith.constant 0 : index
      %20 = vector.load %arg2[%c0_7, %c0_8] : memref<8x256xf32, #tpu.memory_space<vmem>>, vector<8x256xf32>
      %c0_9 = arith.constant 0 : index
      %c0_10 = arith.constant 0 : index
      %21 = vector.load %arg3[%c0_9, %c0_10] : memref<8x256xf32, #tpu.memory_space<vmem>>, vector<8x256xf32>
      %22 = arith.subf %20, %21 : vector<8x256xf32>
      %23 = math.absf %22 : vector<8x256xf32>
      %c8_i32 = arith.constant 8 : i32
      %24 = arith.muli %arg0, %c8_i32 : i32
      %c0_i32_11 = arith.constant 0 : i32
      %25 = arith.addi %24, %c0_i32_11 : i32
      %26 = vector.broadcast %25 : i32 to vector<8x256xi32>
      %27 = arith.addi %26, %19 : vector<8x256xi32>
      %c16_i32 = arith.constant 16 : i32
      %28 = vector.broadcast %c16_i32 : i32 to vector<8x256xi32>
      %29 = arith.cmpi slt, %27, %28 : vector<8x256xi32>
      %30 = arith.andi %29, %18 : vector<8x256xi1>
      %cst = arith.constant 0.000000e+00 : f32
      %31 = vector.broadcast %cst : f32 to vector<8x256xf32>
      %32 = arith.select %30, %23, %31 : vector<8x256xi1>, vector<8x256xf32>
      %33 = arith.addf %12, %32 : vector<8x256xf32>
      %c0_12 = arith.constant 0 : index
      %c0_13 = arith.constant 0 : index
      %34 = vector.load %arg5[%c0_12, %c0_13] : memref<8x256xf32, #tpu.memory_space<vmem>>, vector<8x256xf32>
      tpu.vector_store %arg5[%c0_12, %c0_13], %33 {strides = array<i32>} : memref<8x256xf32, #tpu.memory_space<vmem>>, vector<8x256xf32>,
    } else {
    }
    %c0_i32_4 = arith.constant 0 : i32
    %9 = arith.cmpi eq, %arg1, %c0_i32_4 : i32
    %10 = arith.extui %9 : i1 to i32
    %c0_i32_5 = arith.constant 0 : i32
    %11 = arith.cmpi ne, %10, %c0_i32_5 : i32
    scf.if %11 {
      %c0 = arith.constant 0 : index
      %c0_6 = arith.constant 0 : index
      %12 = vector.load %arg5[%c0, %c0_6] : memref<8x256xf32, #tpu.memory_space<vmem>>, vector<8x256xf32>
      %c0_7 = arith.constant 0 : index
      %c0_8 = arith.constant 0 : index
      %13 = vector.load %arg4[%c0_7, %c0_8] : memref<8x256xf32, #tpu.memory_space<vmem>>, vector<8x256xf32>
      tpu.vector_store %arg4[%c0_7, %c0_8], %12 {strides = array<i32>} : memref<8x256xf32, #tpu.memory_space<vmem>>, vector<8x256xf32>,
    } else {
    }
    return
  }
  func.func @transform_0(%arg0: i32, %arg1: i32) -> (i32, i32) {
    %c0_i32 = arith.constant 0 : i32
    return %arg0, %arg1 : i32, i32
  }
  func.func @transform_1(%arg0: i32, %arg1: i32) -> (i32, i32) {
    %c0_i32 = arith.constant 0 : i32
    return %arg0, %arg1 : i32, i32
  }
  func.func @transform_2(%arg0: i32, %arg1: i32) -> (i32, i32) {
    %c0_i32 = arith.constant 0 : i32
    %c0_i32_0 = arith.constant 0 : i32
    return %arg0, %c0_i32 : i32, i32
  }
}

</mosaic_0001>

<llo_original>
// kernel: tpu_custom_call.1
$region0: #{tpu_custom_call.1}
  #allocation0 [shape = 'u32[]', space=smem, size = 0x4, offset = 0x4, fixed_abs, tag = 'smem constant byte address 0x4 - core index']
  #allocation1 [shape = 'u32[144,128]{1,0:T(1,128)}', space=vmem, size = 0x12000, scoped, tag = 'internal scratch']
  #allocation2 [shape = 'f32[8,256]{1,0:T(8,128)}', space=vmem, size = 0x2000, scoped, tag = 'scratch operand']
  %s0 = inlined_call_operand.hbm [shape: f32[16,200], index: 0, kind: input, shape index: {}]
  %s1 = inlined_call_operand.hbm [shape: f32[16,200], index: 1, kind: input, shape index: {}]
  %s2 = inlined_call_operand.hbm [shape: f32[16,256], index: 2, kind: output, shape index: {}]
  %s3 = sld [smem:[#allocation0]]
  $region61: #{tpu_custom_call.1} parent=0
    _
  %s5 = ssub.s32 1, %s3
  %s6 = scalar_select 0, %s5, %s3
  $region1: #{tpu_custom_call.1} parent=0
    #allocation3 [shape = 'u8[16384]{0}', space=vmem, size = 0x4000, scoped, tag = 'input window, operand 0']
    #allocation4 [shape = 's32[2]{0}', space=sflag, size = 0x8, scoped, tag = 'scoped memory for tpu_custom_call.1']
    #allocation5 [shape = 's32[2]{0}', space=sflag, size = 0x8, scoped, tag = 'scoped memory for tpu_custom_call.1']
    #allocation6 [shape = 'u8[16384]{0}', space=vmem, size = 0x4000, scoped, tag = 'input window, operand 1']
    #allocation7 [shape = 's32[2]{0}', space=sflag, size = 0x8, scoped, tag = 'scoped memory for tpu_custom_call.1']
    #allocation8 [shape = 'u8[16384]{0}', space=vmem, size = 0x4000, scoped, tag = 'output window, operand 0']
    %7 = vsyncpa [#allocation4], 0
    %s8 = scalar_lea.sflag [#allocation4], 1
    %9 = vsyncpa %s8, 0
    %10 = vsyncpa [#allocation7], 0
    %s11 = scalar_lea.sflag [#allocation7], 1
    %12 = vsyncpa %s11, 0
    %13 = vsyncpa [#allocation5], 0
    %s14 = scalar_lea.sflag [#allocation5], 1
    %15 = vsyncpa %s14, 0
    loop: start=0, step=1, limit=4
    $region2: #{tpu_custom_call.1} parent=1 // loop_pre_header
      _
    $region3: #{tpu_custom_call.1} parent=1 // loop_header
      %s17 = sphi 0, %s21
      %p18 = scmp.ge.s32.totalorder %s17, 4
      %s24 = sphi 0, %s36
      %s25 = sphi 0, %s32
      %s26 = sphi 0, %s24
      %s27 = sphi 0, %s25
      %s28 = sphi 0, %s26
      %s29 = sphi 0, %s27
      %s41 = sphi 0, %s43
      %s44 = sphi 0, %s41
      %s45 = sphi 0, %s44
      %s61 = sphi 0, %s45
      %s69 = sphi 0, %s71
      %s72 = sphi 0, %s69
      %s73 = sphi 0, %s72
      %s89 = sphi 0, %s73
      %s95 = sphi 0, %s97
      %s98 = sphi 0, %s95
      %s99 = sphi 0, %s98
      %s115 = sphi 0, %s99
    $region4: #{tpu_custom_call.1} parent=1 // loop_header_branch
      %20 = sbr.rel (%p18) target = $region8
    $region5: #{tpu_custom_call.1} parent=1 // loop_body
      %s22 = ssub.s32 %s17, 1
      %s23 = ssub.s32 %s17, 2
      %s30 = sadd.s32 1, %s25
      %p31 = scmp.ge.s32.totalorder %s30, 1
      %s32 = scalar_select %p31, 0, %s30
      %s33 = sadd.s32 1, %s24
      %s34 = scalar_select %p31, %s33, %s24
      %p35 = scmp.ge.s32.totalorder %s34, 2
      %s36 = scalar_select %p35, 0, %s34
      %s37 = ssub.s32 %s24, %s36
      %s38 = ssub.s32 %s25, %s32
      %s39 = sor.u32 %s37, %s38
      %p40 = scmp.eq.s32.totalorder %s39, 0
      %s42 = sadd.s32 %s41, 1
      %s43 = scalar_select %p40, %s41, %s42
      %p46 = pneg %p40
      %p47 = scmp.eq.s32.totalorder %s17, 1
      %p48 = por %p46, %p47
      %p49 = scmp.ne.s32.totalorder %s41, %s44
      %p50 = scmp.eq.s32.totalorder %s17, 0
      %p51 = por %p49, %p50
      %p52 = scmp.ne.s32.totalorder %s41, %s44
      %p53 = scmp.eq.s32.totalorder %s22, 1
      %p54 = por %p52, %p53
      %p55 = scmp.ne.s32.totalorder %s44, %s45
      %p56 = scmp.eq.s32.totalorder %s22, 0
      %p57 = por %p55, %p56
      %p58 = scmp.ne.s32.totalorder %s44, %s45
      %p59 = scmp.eq.s32.totalorder %s23, 1
      %p60 = por %p58, %p59
      %p62 = scmp.ne.s32.totalorder %s45, %s61
      %p63 = scmp.eq.s32.totalorder %s23, 0
      %p64 = por %p62, %p63
      %s65 = ssub.s32 %s24, %s36
      %s66 = ssub.s32 %s25, %s32
      %s67 = sor.u32 %s65, %s66
      %p68 = scmp.eq.s32.totalorder %s67, 0
      %s70 = sadd.s32 %s69, 1
      %s71 = scalar_select %p68, %s69, %s70
      %p74 = pneg %p68
      %p75 = scmp.eq.s32.totalorder %s17, 1
      %p76 = por %p74, %p75
      %p77 = scmp.ne.s32.totalorder %s69, %s72
      %p78 = scmp.eq.s32.totalorder %s17, 0
      %p79 = por %p77, %p78
      %p80 = scmp.ne.s32.totalorder %s69, %s72
      %p81 = scmp.eq.s32.totalorder %s22, 1
      %p82 = por %p80, %p81
      %p83 = scmp.ne.s32.totalorder %s72, %s73
      %p84 = scmp.eq.s32.totalorder %s22, 0
      %p85 = por %p83, %p84
      %p86 = scmp.ne.s32.totalorder %s72, %s73
      %p87 = scmp.eq.s32.totalorder %s23, 1
      %p88 = por %p86, %p87
      %p90 = scmp.ne.s32.totalorder %s73, %s89
      %p91 = scmp.eq.s32.totalorder %s23, 0
      %p92 = por %p90, %p91
      %s93 = ssub.s32 %s24, %s36
      %p94 = scmp.eq.s32.totalorder %s93, 0
      %s96 = sadd.s32 %s95, 1
      %s97 = scalar_select %p94, %s95, %s96
      %p100 = pneg %p94
      %p101 = scmp.eq.s32.totalorder %s17, 1
      %p102 = por %p100, %p101
      %p103 = scmp.ne.s32.totalorder %s95, %s98
      %p104 = scmp.eq.s32.totalorder %s17, 0
      %p105 = por %p103, %p104
      %p106 = scmp.ne.s32.totalorder %s95, %s98
      %p107 = scmp.eq.s32.totalorder %s22, 1
      %p108 = por %p106, %p107
      %p109 = scmp.ne.s32.totalorder %s98, %s99
      %p110 = scmp.eq.s32.totalorder %s22, 0
      %p111 = por %p109, %p110
      %p112 = scmp.ne.s32.totalorder %s98, %s99
      %p113 = scmp.eq.s32.totalorder %s23, 1
      %p114 = por %p112, %p113
      %p116 = scmp.ne.s32.totalorder %s99, %s115
      %p117 = scmp.eq.s32.totalorder %s23, 0
      %p118 = por %p116, %p117
      %p119 = scmp.le.s32.totalorder 1, %s17
      %p120 = scmp.lt.s32.totalorder %s17, 3
      %p121 = pnand %p119, %p120
      %p122 = pneg %p121
      // Predicated region
      $region9: #{tpu_custom_call.1} parent=5 // pred_check
        _
      $region10: #{tpu_custom_call.1} parent=5 // pred_check_branch
        %124 = sbr.rel (%p121) target = $region12
      $region11: #{tpu_custom_call.1} parent=5 // pred_region
        %s125 = ssub.s32 %s17, 1
      $region12: #{tpu_custom_call.1} parent=5 // pred_fallthru
        _
      %p126 = scmp.lt.s32.totalorder %s17, 2
      // Predicated region
      $region13: #{tpu_custom_call.1} parent=5 // pred_check
        %p127 = pneg %p126
      $region14: #{tpu_custom_call.1} parent=5 // pred_check_branch
        %129 = sbr.rel (%p127) target = $region16
      $region15: #{tpu_custom_call.1} parent=5 // pred_region
        // Predicated region
        $region17: #{tpu_custom_call.1} parent=15 // pred_check
          %p130 = pneg %p51
        $region18: #{tpu_custom_call.1} parent=15 // pred_check_branch
          %132 = sbr.rel (%p130) target = $region20
        $region19: #{tpu_custom_call.1} parent=15 // pred_region
          %s133 = sand.u32 %s41, 1
          %s134 = scalar_lea.sflag [#allocation4], %s133
          %s135 = sand.u32 %s41, 1
          %s136 = smul.addr %s135, 16
          %s137 = scalar_lea.vmem [#allocation3], %s136
          %s138 = smul.u32 2, %s25
          %s140 = ssub.s32 256, 256
          %141 = vsyncadd %s134, %s140
          %s142 = smul.addr %s24, 2
          %s143 = sadd.s32 %s138, %s142
          %s144 = smul.addr %s143, 128
          %s145 = scalar_lea.hbm %s0, %s144
          %s147 = sshll.u32 %s137, 4
          %s148 = int_to_ptr.vmem [resolvable:$true] %s147
          %150 = dma.hbm_to_vmem [thread:$0]  %s145, 256, %s148, %s134
        $region20: #{tpu_custom_call.1} parent=15 // pred_fallthru
          _
        // Predicated region
        $region21: #{tpu_custom_call.1} parent=15 // pred_check
          %p151 = pneg %p79
        $region22: #{tpu_custom_call.1} parent=15 // pred_check_branch
          %153 = sbr.rel (%p151) target = $region24
        $region23: #{tpu_custom_call.1} parent=15 // pred_region
          %s154 = sand.u32 %s69, 1
          %s155 = scalar_lea.sflag [#allocation7], %s154
          %s156 = sand.u32 %s69, 1
          %s157 = smul.addr %s156, 16
          %s158 = scalar_lea.vmem [#allocation6], %s157
          %s159 = smul.u32 2, %s25
          %s161 = ssub.s32 256, 256
          %162 = vsyncadd %s155, %s161
          %s163 = smul.addr %s24, 2
          %s164 = sadd.s32 %s159, %s163
          %s165 = smul.addr %s164, 128
          %s166 = scalar_lea.hbm %s1, %s165
          %s168 = sshll.u32 %s158, 4
          %s169 = int_to_ptr.vmem [resolvable:$true] %s168
          %171 = dma.hbm_to_vmem [thread:$0]  %s166, 256, %s169, %s155
        $region24: #{tpu_custom_call.1} parent=15 // pred_fallthru
          _
      $region16: #{tpu_custom_call.1} parent=5 // pred_fallthru
        _
      %p172 = scmp.le.s32.totalorder 1, %s17
      %p173 = scmp.lt.s32.totalorder %s17, 3
      %p174 = pnand %p172, %p173
      %p175 = pneg %p174
      // Predicated region
      $region25: #{tpu_custom_call.1} parent=5 // pred_check
        _
      $region26: #{tpu_custom_call.1} parent=5 // pred_check_branch
        %177 = sbr.rel (%p174) target = $region28
      $region27: #{tpu_custom_call.1} parent=5 // pred_region
        %s178 = ssub.s32 %s17, 1
        %s179 = sand.u32 %s44, 1
        %s180 = scalar_lea.sflag [#allocation4], %s179
        %s181 = sand.u32 %s44, 1
        %s182 = smul.addr %s181, 16
        %s183 = scalar_lea.vmem [#allocation3], %s182
        // Predicated region
        $region29: #{tpu_custom_call.1} parent=27 // pred_check
          %p184 = pneg %p57
        $region30: #{tpu_custom_call.1} parent=27 // pred_check_branch
          %186 = sbr.rel (%p184) target = $region32
        $region31: #{tpu_custom_call.1} parent=27 // pred_region
          %187 = dma.done %s180, 256
        $region32: #{tpu_custom_call.1} parent=27 // pred_fallthru
          _
        %s188 = sand.u32 %s72, 1
        %s189 = scalar_lea.sflag [#allocation7], %s188
        %s190 = sand.u32 %s72, 1
        %s191 = smul.addr %s190, 16
        %s192 = scalar_lea.vmem [#allocation6], %s191
        // Predicated region
        $region33: #{tpu_custom_call.1} parent=27 // pred_check
          %p193 = pneg %p85
        $region34: #{tpu_custom_call.1} parent=27 // pred_check_branch
          %195 = sbr.rel (%p193) target = $region36
        $region35: #{tpu_custom_call.1} parent=27 // pred_region
          %196 = dma.done %s189, 256
        $region36: #{tpu_custom_call.1} parent=27 // pred_fallthru
          _
        %s197 = sand.u32 %s44, 1
        %s198 = scalar_lea.sflag [#allocation4], %s197
        %s199 = sand.u32 %s44, 1
        %s200 = smul.addr %s199, 16
        %s201 = scalar_lea.vmem [#allocation3], %s200
        %p202 = pneg %p57
        %p203 = pneg %p54
        %s204 = sand.u32 %s72, 1
        %s205 = scalar_lea.sflag [#allocation7], %s204
        %s206 = sand.u32 %s72, 1
        %s207 = smul.addr %s206, 16
        %s208 = scalar_lea.vmem [#allocation6], %s207
        %p209 = pneg %p85
        %p210 = pneg %p82
        %p211 = pneg %p111
        %p212 = pneg %p108
        %s213 = sand.u32 %s98, 1
        %s214 = scalar_lea.sflag [#allocation5], %s213
        %s215 = sand.u32 %s98, 1
        %s216 = smul.addr %s215, 16
        %s217 = scalar_lea.vmem [#allocation8], %s216
        %s218 = smul.u32 2, %s27
        %s219 = smul.u32 2, %s27
        %p220 = scmp.eq.s32.totalorder %s27, 0
        // Predicated region
        $region37: #{tpu_custom_call.1} parent=27 // pred_check
          %p221 = pneg %p220
        $region38: #{tpu_custom_call.1} parent=27 // pred_check_branch
          %223 = sbr.rel (%p221) target = $region40
        $region39: #{tpu_custom_call.1} parent=27 // pred_region
          %224 = vst [vmem:[#allocation2] sm:$0xff] 0.0
          %225 = vst [vmem:[#allocation2 + $0x8] sm:$0xff] 0.0
        $region40: #{tpu_custom_call.1} parent=27 // pred_fallthru
          _
        %p226 = scmp.ne.s32.totalorder %s27, 0
        // Predicated region
        $region41: #{tpu_custom_call.1} parent=27 // pred_check
          %p227 = pneg %p226
        $region42: #{tpu_custom_call.1} parent=27 // pred_check_branch
          %229 = sbr.rel (%p227) target = $region44
        $region43: #{tpu_custom_call.1} parent=27 // pred_region
          %v230 = vld [vmem:[#allocation2] sm:$0xff]
          %v231 = vld [vmem:[#allocation2 + $0x8] sm:$0xff]
          %v232 = vld [vmem:[%s183] sm:$0xff]
          %v233 = vld [vmem:[%s183 + $0x8] sm:$0xff]
          %v234 = vld [vmem:[%s192] sm:$0xff]
          %v235 = vld [vmem:[%s192 + $0x8] sm:$0xff]
          %v236 = vsub.f32 %v232, %v234
          %v237 = vsub.f32 %v233, %v235
          %v238 = vand.u32 2147483647, %v236
          %v239 = vand.u32 2147483647, %v237
          %v240 = vadd.f32 %v230, %v238
          %v241 = vadd.f32 %v231, %v239
          %242 = vst [vmem:[#allocation2] sm:$0xff] %v240
          %243 = vst [vmem:[#allocation2 + $0x8] sm:$0xff] %v241
        $region44: #{tpu_custom_call.1} parent=27 // pred_fallthru
          _
        // Predicated region
        $region45: #{tpu_custom_call.1} parent=27 // pred_check
          %p244 = pneg %p220
        $region46: #{tpu_custom_call.1} parent=27 // pred_check_branch
          %246 = sbr.rel (%p244) target = $region48
        $region47: #{tpu_custom_call.1} parent=27 // pred_region
          %v247 = vld [vmem:[#allocation2] sm:$0xff]
          %v248 = vld [vmem:[#allocation2 + $0x8] sm:$0xff]
          %s249 = smul.u32 %s27, 256
          %v250 = vlaneseq
          %v251 = vand.u32 %v250, 127
          %v252 = vadd.s32 %v251, 128
          %v253 = vstv %s249
          %v254 = vadd.s32 %v253, %v251
          %v255 = vadd.s32 %v253, %v252
          %vm256 = vcmp.lt.s32.totalorder %v254, 200
          %vm257 = vcmp.lt.s32.totalorder %v255, 200
          %v258 = vlaneseq
          %v259 = vshrl.u32 %v258, 7
          %v260 = vld [vmem:[%s183] sm:$0xff]
          %v261 = vld [vmem:[%s183 + $0x8] sm:$0xff]
          %v262 = vld [vmem:[%s192] sm:$0xff]
          %v263 = vld [vmem:[%s192 + $0x8] sm:$0xff]
          %v264 = vsub.f32 %v260, %v262
          %v265 = vsub.f32 %v261, %v263
          %v266 = vand.u32 2147483647, %v264
          %v267 = vand.u32 2147483647, %v265
          %s268 = smul.u32 %s26, 8
          %v269 = vstv %s268
          %v270 = vadd.s32 %v269, %v259
          %vm271 = vcmp.lt.s32.totalorder %v270, 16
          %vm272 = vmand %vm271, %vm256
          %vm273 = vmand %vm271, %vm257
          %v274 = vsel %vm272, %v266, 0.0
          %v275 = vsel %vm273, %v267, 0.0
          %v276 = vadd.f32 %v247, %v274
          %v277 = vadd.f32 %v248, %v275
          %278 = vst [vmem:[#allocation2] sm:$0xff] %v276
          %279 = vst [vmem:[#allocation2 + $0x8] sm:$0xff] %v277
          %v280 = vld [vmem:[#allocation2] sm:$0xff]
          %v281 = vld [vmem:[#allocation2 + $0x8] sm:$0xff]
          %282 = vst [vmem:[%s217] sm:$0xff] %v280
          %283 = vst [vmem:[%s217 + $0x8] sm:$0xff] %v281
        $region48: #{tpu_custom_call.1} parent=27 // pred_fallthru
          _
        %s284 = sand.u32 %s98, 1
        %s285 = scalar_lea.sflag [#allocation5], %s284
        %s286 = sand.u32 %s98, 1
        %s287 = smul.addr %s286, 16
        %s288 = scalar_lea.vmem [#allocation8], %s287
        // Predicated region
        $region49: #{tpu_custom_call.1} parent=27 // pred_check
          %p289 = pneg %p108
        $region50: #{tpu_custom_call.1} parent=27 // pred_check_branch
          %291 = sbr.rel (%p289) target = $region52
        $region51: #{tpu_custom_call.1} parent=27 // pred_region
          %s293 = ssub.s32 256, 256
          %294 = vsyncadd %s285, %s293
          %s295 = smul.addr %s26, 2
          %s296 = smul.addr %s295, 128
          %s297 = scalar_lea.hbm %s2, %s296
          %s299 = sshll.u32 %s288, 4
          %s300 = int_to_ptr.vmem [resolvable:$true] %s299
          %302 = dma.vmem_to_hbm [thread:$0]  %s300, 256, %s297, %s285
        $region52: #{tpu_custom_call.1} parent=27 // pred_fallthru
          _
      $region28: #{tpu_custom_call.1} parent=5 // pred_fallthru
        _
      %p303 = scmp.le.s32.totalorder 2, %s17
      // Predicated region
      $region53: #{tpu_custom_call.1} parent=5 // pred_check
        %p304 = pneg %p303
      $region54: #{tpu_custom_call.1} parent=5 // pred_check_branch
        %306 = sbr.rel (%p304) target = $region56
      $region55: #{tpu_custom_call.1} parent=5 // pred_region
        %s307 = ssub.s32 %s17, 2
        // Predicated region
        $region57: #{tpu_custom_call.1} parent=55 // pred_check
          %p308 = pneg %p114
        $region58: #{tpu_custom_call.1} parent=55 // pred_check_branch
          %310 = sbr.rel (%p308) target = $region60
        $region59: #{tpu_custom_call.1} parent=55 // pred_region
          %s311 = sand.u32 %s99, 1
          %s312 = scalar_lea.sflag [#allocation5], %s311
          %s313 = sand.u32 %s99, 1
          %s314 = smul.addr %s313, 16
          %s315 = scalar_lea.vmem [#allocation8], %s314
          %316 = dma.done %s312, 256
        $region60: #{tpu_custom_call.1} parent=55 // pred_fallthru
          _
      $region56: #{tpu_custom_call.1} parent=5 // pred_fallthru
        _
    $region6: #{tpu_custom_call.1} parent=1 // loop_footer
      %s21 = sadd.s32 1, %s17
    $region7: #{tpu_custom_call.1} parent=1 // loop_footer_branch
      %16 = sbr.rel target = $region3
    $region8: #{tpu_custom_call.1} parent=1 // loop_exit
      _
    %317 = vsyncpa [#allocation4], 1
    %s318 = scalar_lea.sflag [#allocation4], 1
    %319 = vsyncpa %s318, 1
    %320 = vsyncpa [#allocation7], 1
    %s321 = scalar_lea.sflag [#allocation7], 1
    %322 = vsyncpa %s321, 1
    %323 = vsyncpa [#allocation5], 1
    %s324 = scalar_lea.sflag [#allocation5], 1
    %325 = vsyncpa %s324, 1

</llo_original>
